<compile_context>
chip_gen: v5e
topology: v5e:2x2
jax: 0.10.0
libtpu: 0.0.40
codegen_flags: <defaults>
</compile_context>

<pallas_src>
import functools

import jax
import jax.numpy as jnp
from jax.experimental import pallas as pl
from jax.experimental.pallas import tpu as pltpu


# ----------------------------------------------------------------------------
# Pallas matmul kernel: bf16 operands, f32 accumulator,
# fused bias + optional residual + activation epilogue.
# ----------------------------------------------------------------------------
def _make_matmul_kernel(activation: str, has_residual: bool):
    def kernel(*refs):
        if has_residual:
            a_ref, b_ref, bias_ref, res_ref, o_ref, acc_ref = refs
        else:
            a_ref, b_ref, bias_ref, o_ref, acc_ref = refs
            res_ref = None

        @pl.when(pl.program_id(2) == 0)
        def _():
            acc_ref[...] = jnp.zeros_like(acc_ref)

        acc_ref[...] += jnp.dot(a_ref[...], b_ref[...],
                                preferred_element_type=jnp.float32)

        @pl.when(pl.program_id(2) == pl.num_programs(2) - 1)
        def _():
            y = acc_ref[...] + bias_ref[...].astype(jnp.float32)
            if has_residual:
                y = y + res_ref[...].astype(jnp.float32)
            if activation == "relu":
                y = jnp.maximum(y, 0.0)
            elif activation == "leaky":
                y = jnp.where(y > 0, y, 0.1 * y)
            elif activation == "sigmoid":
                y = jax.nn.sigmoid(y)
            # "none": just bias (+residual)
            o_ref[...] = y.astype(o_ref.dtype)

    return kernel


def _round_up(x, m):
    return ((x + m - 1) // m) * m


def _pick_tk(K):
    """Largest K-tile (<=512, multiple of 128) that divides round_up(K,128)."""
    Kr = _round_up(K, 128)
    for cand in (512, 384, 256, 128):
        if Kr % cand == 0:
            return cand
    return 128


@functools.lru_cache(maxsize=None)
def _get_matmul_fn(Mp, Kp, Np, tm, tn, tk, activation, has_residual,
                   out_dtype_name):
    out_dtype = jnp.dtype(out_dtype_name)
    kernel = _make_matmul_kernel(activation, has_residual)
    in_specs = [
        pl.BlockSpec((tm, tk), lambda i, j, k: (i, k)),   # A (bf16)
        pl.BlockSpec((tk, tn), lambda i, j, k: (k, j)),   # B (bf16)
        pl.BlockSpec((1, tn), lambda i, j, k: (0, j)),    # bias (f32)
    ]
    if has_residual:
        in_specs.append(pl.BlockSpec((tm, tn), lambda i, j, k: (i, j)))  # residual
    bytes_accessed = (Mp * Kp + Kp * Np) * 2 + Mp * Np * out_dtype.itemsize
    return pl.pallas_call(
        kernel,
        out_shape=jax.ShapeDtypeStruct((Mp, Np), out_dtype),
        grid_spec=pltpu.PrefetchScalarGridSpec(
            num_scalar_prefetch=0,
            grid=(Mp // tm, Np // tn, Kp // tk),
            in_specs=in_specs,
            out_specs=pl.BlockSpec((tm, tn), lambda i, j, k: (i, j)),
            scratch_shapes=[pltpu.VMEM((tm, tn), jnp.float32)],
        ),
        compiler_params=pltpu.CompilerParams(
            dimension_semantics=("parallel", "parallel", "arbitrary")),
        cost_estimate=pl.CostEstimate(
            flops=2 * Mp * Kp * Np,
            transcendentals=Mp * Np if activation == "sigmoid" else 0,
            bytes_accessed=bytes_accessed),
    )


def pallas_matmul_bias_act(a, w, bias, activation, residual=None,
                           out_dtype=jnp.bfloat16):
    """a: (M, K) bf16, w: (K, N) bf16, bias: (N,) f32,
    residual: optional (M, N) -> (M, N) out_dtype."""
    M, K = a.shape
    K2, N = w.shape
    assert K == K2
    tm = min(256, _round_up(M, 16))
    tn = min(256, _round_up(N, 128))
    tk = _pick_tk(K)
    Mp, Kp, Np = _round_up(M, tm), _round_up(K, tk), _round_up(N, tn)

    a_p = jnp.pad(a, ((0, Mp - M), (0, Kp - K)))
    w_p = jnp.pad(w, ((0, Kp - K), (0, Np - N)))
    b_p = jnp.pad(bias.reshape(1, -1), ((0, 0), (0, Np - N)))
    args = [a_p, w_p, b_p]
    if residual is not None:
        args.append(jnp.pad(residual, ((0, Mp - M), (0, Np - N))))

    fn = _get_matmul_fn(Mp, Kp, Np, tm, tn, tk, activation,
                        residual is not None, jnp.dtype(out_dtype).name)
    out = fn(*args)
    return out[:M, :N]


# ----------------------------------------------------------------------------
# Glue: NHWC im2col, conv wrapper, maxpool
# ----------------------------------------------------------------------------
def im2col_nhwc(x, kh, kw, stride, pad):
    """x: (N, H, W, C) -> patches (N*Ho*Wo, kh*kw*C), row order (n, ho, wo)."""
    N, H, W, C = x.shape
    if kh == 1 and kw == 1 and pad == 0:
        if stride != 1:
            x = x[:, ::stride, ::stride, :]
        Ho, Wo = x.shape[1], x.shape[2]
        return x.reshape(N * Ho * Wo, C), Ho, Wo
    xp = jnp.pad(x, ((0, 0), (pad, pad), (pad, pad), (0, 0)))
    Hp, Wp = H + 2 * pad, W + 2 * pad
    Ho = (Hp - kh) // stride + 1
    Wo = (Wp - kw) // stride + 1
    # TODO(synk): im2col patches are still materialized in HBM; in-kernel patch
    # gathering (per-(kh,kw) K-tile index_map) would keep the kh*kw expansion in VMEM.
    cols = []
    for i in range(kh):
        for j in range(kw):
            cols.append(xp[:,
                           i:i + stride * (Ho - 1) + 1:stride,
                           j:j + stride * (Wo - 1) + 1:stride, :])
    patches = jnp.concatenate(cols, axis=-1)              # (N, Ho, Wo, kh*kw*C)
    return patches.reshape(N * Ho * Wo, kh * kw * C), Ho, Wo


def conv2d_nhwc(x, cp, stride, activation, residual=None,
                out_dtype=jnp.bfloat16):
    """x: (N,H,W,Cin) bf16, cp['w']: (kh,kw,Cin,Cout) bf16, cp['b']: (Cout,) f32."""
    N = x.shape[0]
    kh, kw, cin, cout = cp["w"].shape
    pad = kh // 2
    patches, Ho, Wo = im2col_nhwc(x, kh, kw, stride, pad)
    wm = cp["w"].reshape(kh * kw * cin, cout)
    res2d = None
    if residual is not None:
        res2d = residual.reshape(N * Ho * Wo, cout)
    out = pallas_matmul_bias_act(patches, wm, cp["b"], activation,
                                 residual=res2d, out_dtype=out_dtype)
    return out.reshape(N, Ho, Wo, cout)


def maxpool2d_nhwc(x, k, stride, pad):
    # TODO(synk): max-pool left in glue (lax.reduce_window); conv matmuls are the
    # Pallas hot path. Semantics match nn.MaxPool2d (padding excluded from max).
    return jax.lax.reduce_window(
        x, jnp.asarray(-jnp.inf, x.dtype), jax.lax.max,
        window_dimensions=(1, k, k, 1),
        window_strides=(1, stride, stride, 1),
        padding=((0, 0), (pad, pad), (pad, pad), (0, 0)))


# ----------------------------------------------------------------------------
# Parameters (deterministic synthetic init) + one-time BN folding / bf16 cast
# ----------------------------------------------------------------------------
class _Keys:
    def __init__(self, seed):
        self._key = jax.random.PRNGKey(seed)

    def next(self):
        self._key, sub = jax.random.split(self._key)
        return sub


def _conv_w(ks, o, c, k):
    fan_in = c * k * k
    return (jax.random.normal(ks.next(), (o, c, k, k), jnp.float32)
            / jnp.sqrt(float(fan_in)))


def _bn(c):
    return dict(gamma=jnp.ones((c,), jnp.float32),
                beta=jnp.zeros((c,), jnp.float32),
                mean=jnp.zeros((c,), jnp.float32),
                var=jnp.ones((c,), jnp.float32),
                eps=1e-5)


def make_params(seed=0, num_classes=2):
    ks = _Keys(seed)
    feat = 512

    def conv_bn(o, c, k):
        return dict(w=_conv_w(ks, o, c, k), bn=_bn(o))

    def basic_block(cin, cout, stride):
        d = dict(conv1=conv_bn(cout, cin, 3), conv2=conv_bn(cout, cout, 3))
        if stride != 1 or cin != cout:
            d["down"] = conv_bn(cout, cin, 1)
        return d

    params = {}
    params["stem"] = conv_bn(64, 3, 7)
    params["layer1"] = [basic_block(64, 64, 1), basic_block(64, 64, 1)]
    params["layer2"] = [basic_block(64, 128, 2), basic_block(128, 128, 1)]
    params["layer3"] = [basic_block(128, 256, 2), basic_block(256, 256, 1)]
    params["layer4"] = [basic_block(256, 512, 2), basic_block(512, 512, 1)]
    # neck: SPP -> CBL(4*feat, feat, 1) -> 3x CBL(feat, feat, 3)
    params["neck"] = [conv_bn(feat, 4 * feat, 1),
                      conv_bn(feat, feat, 3),
                      conv_bn(feat, feat, 3),
                      conv_bn(feat, feat, 3)]
    # head: CBL(feat, feat//2, 1), CBL(feat//2, feat, 3, p=1), repeated
    params["head"] = [conv_bn(feat // 2, feat, 1),
                      conv_bn(feat, feat // 2, 3),
                      conv_bn(feat // 2, feat, 1),
                      conv_bn(feat, feat // 2, 3)]
    pred_out = (4 + 1) * 2 + num_classes
    params["pred"] = dict(
        w=_conv_w(ks, pred_out, feat, 1),
        b=0.01 * jax.random.normal(ks.next(), (pred_out,), jnp.float32))
    return params


def _fold_conv_bn(p):
    """Fold BN into conv, lay weight out as (kh, kw, Cin, Cout) bf16, bias f32."""
    w, bn = p["w"], p["bn"]
    scale = bn["gamma"] / jnp.sqrt(bn["var"] + bn["eps"])
    wf = w * scale[:, None, None, None]                    # (O, C, kh, kw)
    bf = bn["beta"] - bn["mean"] * scale
    wm = wf.transpose(2, 3, 1, 0).astype(jnp.bfloat16)     # (kh, kw, C, O)
    return dict(w=wm, b=bf.astype(jnp.float32))


def prepare_params(raw):
    """One-time inference prep: BN folding + bf16 weight cast (outside jit)."""
    out = {"stem": _fold_conv_bn(raw["stem"])}
    for name in ("layer1", "layer2", "layer3", "layer4"):
        blocks = []
        for bp in raw[name]:
            d = dict(conv1=_fold_conv_bn(bp["conv1"]),
                     conv2=_fold_conv_bn(bp["conv2"]))
            if "down" in bp:
                d["down"] = _fold_conv_bn(bp["down"])
            blocks.append(d)
        out[name] = blocks
    out["neck"] = [_fold_conv_bn(p) for p in raw["neck"]]
    out["head"] = [_fold_conv_bn(p) for p in raw["head"]]
    out["pred"] = dict(
        w=raw["pred"]["w"].transpose(2, 3, 1, 0).astype(jnp.bfloat16),
        b=raw["pred"]["b"].astype(jnp.float32))
    return out


# ----------------------------------------------------------------------------
# Forward pass (NHWC internally; residual add+ReLU fused into conv2 epilogue)
# ----------------------------------------------------------------------------
_LAYER_STRIDES = {"layer1": 1, "layer2": 2, "layer3": 2, "layer4": 2}


def _run_basic_block(x, bp, stride):
    out = conv2d_nhwc(x, bp["conv1"], stride=stride, activation="relu")
    if "down" in bp:
        identity = conv2d_nhwc(x, bp["down"], stride=stride, activation="none")
    else:
        identity = x
    # residual add + ReLU fused in the conv2 matmul epilogue
    return conv2d_nhwc(out, bp["conv2"], stride=1, activation="relu",
                       residual=identity)


def yolov1_forward(params, x):
    # NCHW -> NHWC once at the boundary; bf16 activations internally.
    x = x.transpose(0, 2, 3, 1).astype(jnp.bfloat16)

    # backbone (resnet18 minus avgpool/fc)
    x = conv2d_nhwc(x, params["stem"], stride=2, activation="relu")
    x = maxpool2d_nhwc(x, 3, 2, 1)
    for layer_name in ("layer1", "layer2", "layer3", "layer4"):
        for idx, bp in enumerate(params[layer_name]):
            stride = _LAYER_STRIDES[layer_name] if idx == 0 else 1
            x = _run_basic_block(x, bp, stride)

    # neck: SPP then CBLs (LeakyReLU 0.1)
    x = jnp.concatenate(
        [x, maxpool2d_nhwc(x, 5, 1, 2), maxpool2d_nhwc(x, 9, 1, 4),
         maxpool2d_nhwc(x, 13, 1, 6)], axis=-1)
    for p in params["neck"]:
        x = conv2d_nhwc(x, p, stride=1, activation="leaky")

    # head
    for p in params["head"]:
        x = conv2d_nhwc(x, p, stride=1, activation="leaky")

    # pred: 1x1 conv (with bias) + sigmoid, fused in the Pallas matmul kernel.
    x = conv2d_nhwc(x, params["pred"], stride=1, activation="sigmoid",
                    out_dtype=jnp.float32)

    # Already NHWC, so torch.permute(x, (0, 2, 3, 1)) is a no-op here.
    return x


# ----------------------------------------------------------------------------
# Main
# ----------------------------------------------------------------------------
if __name__ == "__main__":
    key = jax.random.PRNGKey(0)

    # --- quick numerical self-check of the Pallas matmul kernel --------------
    k1, k2, k3, k4 = jax.random.split(key, 4)
    M, K, N = 96, 147, 76
    a = jax.random.normal(k1, (M, K), jnp.float32).astype(jnp.bfloat16)
    w = jax.random.normal(k2, (K, N), jnp.float32).astype(jnp.bfloat16)
    b = jax.random.normal(k3, (N,), jnp.float32)
    got = jax.jit(lambda a, w, b: pallas_matmul_bias_act(
        a, w, b, "leaky", out_dtype=jnp.float32))(a, w, b)
    ref = jnp.dot(a.astype(jnp.float32), w.astype(jnp.float32)) + b[None, :]
    ref = jnp.where(ref > 0, ref, 0.1 * ref)
    err = jnp.max(jnp.abs(got - ref))
    assert bool(err < 5e-2), f"matmul kernel mismatch, max err {err}"

    # --- full forward ---------------------------------------------------------
    # Small but structurally valid input: 3-channel image, spatial divisible by 32.
    x = jax.random.normal(k4, (2, 3, 64, 64), jnp.float32)

    raw = make_params(seed=0, num_classes=2)
    params = prepare_params(raw)            # BN fold + bf16 cast, once

    fwd = jax.jit(yolov1_forward)
    out = fwd(params, x)
    out = jax.block_until_ready(out)

    Nb, _, H, W = x.shape
    expected = (Nb, H // 32, W // 32, (4 + 1) * 2 + 2)
    assert out.shape == expected, (out.shape, expected)
    assert out.dtype == jnp.float32
    assert bool(jnp.all((out >= 0.0) & (out <= 1.0)))  # sigmoid output range

    print("KERNEL_OK")
</pallas_src>

<mosaic_0001>
module attributes {stable_mosaic.version = 11 : i64} {
  func.func @kernel(%arg0: i32, %arg1: i32, %arg2: i32, %arg3: memref<96x256xbf16, #tpu.memory_space<vmem>>, %arg4: memref<256x128xbf16, #tpu.memory_space<vmem>>, %arg5: memref<1x128xf32, #tpu.memory_space<vmem>>, %arg6: memref<96x128xf32, #tpu.memory_space<vmem>>, %arg7: memref<96x128xf32, #tpu.memory_space<vmem>>) attributes {dimension_semantics = [#tpu.dimension_semantics<parallel>, #tpu.dimension_semantics<parallel>, #tpu.dimension_semantics<arbitrary>], iteration_bounds = array<i64: 1, 1, 1>, scalar_prefetch = 0 : i64, scratch_operands = 1 : i64, tpu.core_type = #tpu.core_type<tc>, window_params = [{transform_indices = @transform_0, window_bounds = array<i64: 96, 256>}, {transform_indices = @transform_1, window_bounds = array<i64: 256, 128>}, {transform_indices = @transform_2, window_bounds = array<i64: 1, 128>}, {transform_indices = @transform_3, window_bounds = array<i64: 96, 128>}]} {
    %c0_i32 = arith.constant 0 : i32
    %0 = arith.cmpi eq, %arg2, %c0_i32 : i32
    %1 = arith.extui %0 : i1 to i32
    %c0_i32_0 = arith.constant 0 : i32
    %2 = arith.cmpi ne, %1, %c0_i32_0 : i32
    scf.if %2 {
      %cst_10 = arith.constant 0.000000e+00 : f32
      %12 = vector.broadcast %cst_10 : f32 to vector<96x128xf32>
      %c0_11 = arith.constant 0 : index
      %c0_12 = arith.constant 0 : index
      %13 = vector.load %arg7[%c0_11, %c0_12] : memref<96x128xf32, #tpu.memory_space<vmem>>, vector<96x128xf32>
      tpu.vector_store %arg7[%c0_11, %c0_12], %12 {strides = array<i32>} : memref<96x128xf32, #tpu.memory_space<vmem>>, vector<96x128xf32>,
    } else {
    }
    %c0 = arith.constant 0 : index
    %c0_1 = arith.constant 0 : index
    %3 = vector.load %arg7[%c0, %c0_1] : memref<96x128xf32, #tpu.memory_space<vmem>>, vector<96x128xf32>
    %c0_2 = arith.constant 0 : index
    %c0_3 = arith.constant 0 : index
    %4 = vector.load %arg3[%c0_2, %c0_3] : memref<96x256xbf16, #tpu.memory_space<vmem>>, vector<96x256xbf16>
    %c0_4 = arith.constant 0 : index
    %c0_5 = arith.constant 0 : index
    %5 = vector.load %arg4[%c0_4, %c0_5] : memref<256x128xbf16, #tpu.memory_space<vmem>>, vector<256x128xbf16>
    %cst = arith.constant dense<0.000000e+00> : vector<96x128xf32>
    %6 = tpu.matmul %4, %5, %cst {dimension_numbers = #tpu.dot_dimension_numbers<[1], [0], [0], [1], [0, 0, 1, 1], [], []>} : vector<96x256xbf16>, vector<256x128xbf16>, vector<96x128xf32> -> vector<96x128xf32>
    %7 = arith.addf %3, %6 : vector<96x128xf32>
    %c0_6 = arith.constant 0 : index
    %c0_7 = arith.constant 0 : index
    %8 = vector.load %arg7[%c0_6, %c0_7] : memref<96x128xf32, #tpu.memory_space<vmem>>, vector<96x128xf32>
    tpu.vector_store %arg7[%c0_6, %c0_7], %7 {strides = array<i32>} : memref<96x128xf32, #tpu.memory_space<vmem>>, vector<96x128xf32>,
    %c0_i32_8 = arith.constant 0 : i32
    %9 = arith.cmpi eq, %arg2, %c0_i32_8 : i32
    %10 = arith.extui %9 : i1 to i32
    %c0_i32_9 = arith.constant 0 : i32
    %11 = arith.cmpi ne, %10, %c0_i32_9 : i32
    scf.if %11 {
      %c0_10 = arith.constant 0 : index
      %c0_11 = arith.constant 0 : index
      %12 = vector.load %arg7[%c0_10, %c0_11] : memref<96x128xf32, #tpu.memory_space<vmem>>, vector<96x128xf32>
      %c0_12 = arith.constant 0 : index
      %c0_13 = arith.constant 0 : index
      %13 = vector.load %arg5[%c0_12, %c0_13] : memref<1x128xf32, #tpu.memory_space<vmem>>, vector<1x128xf32>
      %14 = vector.broadcast %13 : vector<1x128xf32> to vector<96x128xf32>
      %15 = arith.addf %12, %14 : vector<96x128xf32>
      %cst_14 = arith.constant 0.000000e+00 : f32
      %16 = vector.broadcast %cst_14 : f32 to vector<96x128xf32>
      %17 = arith.cmpf ogt, %15, %16 : vector<96x128xf32>
      %cst_15 = arith.constant 1.000000e-01 : f32
      %18 = vector.broadcast %cst_15 : f32 to vector<96x128xf32>
      %19 = arith.mulf %18, %15 : vector<96x128xf32>
      %20 = arith.select %17, %15, %19 : vector<96x128xi1>, vector<96x128xf32>
      %c0_16 = arith.constant 0 : index
      %c0_17 = arith.constant 0 : index
      %21 = vector.load %arg6[%c0_16, %c0_17] : memref<96x128xf32, #tpu.memory_space<vmem>>, vector<96x128xf32>
      tpu.vector_store %arg6[%c0_16, %c0_17], %20 {strides = array<i32>} : memref<96x128xf32, #tpu.memory_space<vmem>>, vector<96x128xf32>,
    } else {
    }
    return
  }
  func.func @transform_0(%arg0: i32, %arg1: i32, %arg2: i32) -> (i32, i32) {
    %c0_i32 = arith.constant 0 : i32
    return %arg0, %arg2 : i32, i32
  }
  func.func @transform_1(%arg0: i32, %arg1: i32, %arg2: i32) -> (i32, i32) {
    %c0_i32 = arith.constant 0 : i32
    return %arg2, %arg1 : i32, i32
  }
  func.func @transform_2(%arg0: i32, %arg1: i32, %arg2: i32) -> (i32, i32) {
    %c0_i32 = arith.constant 0 : i32
    %c0_i32_0 = arith.constant 0 : i32
    return %c0_i32, %arg1 : i32, i32
  }
  func.func @transform_3(%arg0: i32, %arg1: i32, %arg2: i32) -> (i32, i32) {
    %c0_i32 = arith.constant 0 : i32
    return %arg0, %arg1 : i32, i32
  }
}

</mosaic_0001>

<llo_original>
// kernel: _lambda_.1
$region0: #{_lambda_.1}
  #allocation0 [shape = 'u32[]', space=smem, size = 0x4, offset = 0x4, fixed_abs, tag = 'smem constant byte address 0x4 - core index']
  #allocation1 [shape = 'u32[72,128]{1,0:T(1,128)}', space=vmem, size = 0x9000, scoped, tag = 'internal scratch']
  #allocation2 [shape = 'f32[96,128]{1,0:T(8,128)}', space=vmem, size = 0xc000, scoped, tag = 'scratch operand']
  %s0 = inlined_call_operand.vmem [shape: bf16[96,256], index: 0, kind: input, shape index: {}]
  %s1 = inlined_call_operand.vmem [shape: bf16[256,128], index: 1, kind: input, shape index: {}]
  %s2 = inlined_call_operand.vmem [shape: f32[1,128], index: 2, kind: input, shape index: {}]
  %s3 = inlined_call_operand.vmem [shape: f32[96,128], index: 3, kind: output, shape index: {}]
  %s4 = sld [smem:[#allocation0]]
  $region30: #{_lambda_.1} parent=0
    _
  %s6 = ssub.s32 1, %s4
  %s7 = scalar_select 0, %s6, %s4
  // Predicated region
  $region2: #{_lambda_.1} parent=0 // pred_check
    _
  $region3: #{_lambda_.1} parent=0 // pred_check_branch
    %9 = sbr.rel (0) target = $region5
  $region4: #{_lambda_.1} parent=0 // pred_region
    _
  $region5: #{_lambda_.1} parent=0 // pred_fallthru
    _
  // Predicated region
  $region6: #{_lambda_.1} parent=0 // pred_check
    _
  $region7: #{_lambda_.1} parent=0 // pred_check_branch
    %11 = sbr.rel (0) target = $region9
  $region8: #{_lambda_.1} parent=0 // pred_region
    _
  $region9: #{_lambda_.1} parent=0 // pred_fallthru
    _
  // Predicated region
  $region10: #{_lambda_.1} parent=0 // pred_check
    _
  $region11: #{_lambda_.1} parent=0 // pred_check_branch
    %13 = sbr.rel (0) target = $region13
  $region12: #{_lambda_.1} parent=0 // pred_region
    _
  $region13: #{_lambda_.1} parent=0 // pred_fallthru
    _
  %p14 = scmp.eq.s32.totalorder 0, 0
  // Predicated region
  $region14: #{_lambda_.1} parent=0 // pred_check
    %p15 = pneg %p14
  $region15: #{_lambda_.1} parent=0 // pred_check_branch
    %17 = sbr.rel (%p15) target = $region17
  $region16: #{_lambda_.1} parent=0 // pred_region
    %18 = vst [vmem:[#allocation2] sm:$0xff] 0.0
    %19 = vst [vmem:[#allocation2 + $0x8] sm:$0xff] 0.0
    %20 = vst [vmem:[#allocation2 + $0x10] sm:$0xff] 0.0
    %21 = vst [vmem:[#allocation2 + $0x18] sm:$0xff] 0.0
    %22 = vst [vmem:[#allocation2 + $0x20] sm:$0xff] 0.0
    %23 = vst [vmem:[#allocation2 + $0x28] sm:$0xff] 0.0
    %24 = vst [vmem:[#allocation2 + $0x30] sm:$0xff] 0.0
    %25 = vst [vmem:[#allocation2 + $0x38] sm:$0xff] 0.0
    %26 = vst [vmem:[#allocation2 + $0x40] sm:$0xff] 0.0
    %27 = vst [vmem:[#allocation2 + $0x48] sm:$0xff] 0.0
    %28 = vst [vmem:[#allocation2 + $0x50] sm:$0xff] 0.0
    %29 = vst [vmem:[#allocation2 + $0x58] sm:$0xff] 0.0
  $region17: #{_lambda_.1} parent=0 // pred_fallthru
    _
  %v30 = vld [vmem:[#allocation2] sm:$0xff]
  %v31 = vld [vmem:[#allocation2 + $0x8] sm:$0xff]
  %v32 = vld [vmem:[#allocation2 + $0x10] sm:$0xff]
  %v33 = vld [vmem:[#allocation2 + $0x18] sm:$0xff]
  %v34 = vld [vmem:[#allocation2 + $0x20] sm:$0xff]
  %v35 = vld [vmem:[#allocation2 + $0x28] sm:$0xff]
  %v36 = vld [vmem:[#allocation2 + $0x30] sm:$0xff]
  %v37 = vld [vmem:[#allocation2 + $0x38] sm:$0xff]
  %v38 = vld [vmem:[#allocation2 + $0x40] sm:$0xff]
  %v39 = vld [vmem:[#allocation2 + $0x48] sm:$0xff]
  %v40 = vld [vmem:[#allocation2 + $0x50] sm:$0xff]
  %v41 = vld [vmem:[#allocation2 + $0x58] sm:$0xff]
  %v42 = vld [vmem:[%s0] sm:$0xff]
  %v43 = vld [vmem:[%s0 + $0x8] sm:$0xff]
  %v44 = vld [vmem:[%s0 + $0x10] sm:$0xff]
  %v45 = vld [vmem:[%s0 + $0x18] sm:$0xff]
  %v46 = vld [vmem:[%s0 + $0x20] sm:$0xff]
  %v47 = vld [vmem:[%s0 + $0x28] sm:$0xff]
  %v48 = vld [vmem:[%s0 + $0x30] sm:$0xff]
  %v49 = vld [vmem:[%s0 + $0x38] sm:$0xff]
  %v50 = vld [vmem:[%s0 + $0x40] sm:$0xff]
  %v51 = vld [vmem:[%s0 + $0x48] sm:$0xff]
  %v52 = vld [vmem:[%s0 + $0x50] sm:$0xff]
  %v53 = vld [vmem:[%s0 + $0x58] sm:$0xff]
  %v54 = vld [vmem:[%s1] sm:$0xf]
  %v55 = vld [vmem:[%s1 + $0x4] sm:$0xf]
  %v56 = vld [vmem:[%s1 + $0x8] sm:$0xf]
  %v57 = vld [vmem:[%s1 + $0xc] sm:$0xf]
  %v58 = vld [vmem:[%s1 + $0x10] sm:$0xf]
  %v59 = vld [vmem:[%s1 + $0x14] sm:$0xf]
  %v60 = vld [vmem:[%s1 + $0x18] sm:$0xf]
  %v61 = vld [vmem:[%s1 + $0x1c] sm:$0xf]
  %v62 = vld [vmem:[%s1 + $0x20] sm:$0xf]
  %v63 = vld [vmem:[%s1 + $0x24] sm:$0xf]
  %v64 = vld [vmem:[%s1 + $0x28] sm:$0xf]
  %v65 = vld [vmem:[%s1 + $0x2c] sm:$0xf]
  %v66 = vld [vmem:[%s1 + $0x30] sm:$0xf]
  %v67 = vld [vmem:[%s1 + $0x34] sm:$0xf]
  %v68 = vld [vmem:[%s1 + $0x38] sm:$0xf]
  %v69 = vld [vmem:[%s1 + $0x3c] sm:$0xf]
  %v70 = vld [vmem:[%s1 + $0x40] sm:$0xf]
  %v71 = vld [vmem:[%s1 + $0x44] sm:$0xf]
  %v72 = vld [vmem:[%s1 + $0x48] sm:$0xf]
  %v73 = vld [vmem:[%s1 + $0x4c] sm:$0xf]
  %v74 = vld [vmem:[%s1 + $0x50] sm:$0xf]
  %v75 = vld [vmem:[%s1 + $0x54] sm:$0xf]
  %v76 = vld [vmem:[%s1 + $0x58] sm:$0xf]
  %v77 = vld [vmem:[%s1 + $0x5c] sm:$0xf]
  %v78 = vld [vmem:[%s1 + $0x60] sm:$0xf]
  %v79 = vld [vmem:[%s1 + $0x64] sm:$0xf]
  %v80 = vld [vmem:[%s1 + $0x68] sm:$0xf]
  %v81 = vld [vmem:[%s1 + $0x6c] sm:$0xf]
  %v82 = vld [vmem:[%s1 + $0x70] sm:$0xf]
  %v83 = vld [vmem:[%s1 + $0x74] sm:$0xf]
  %v84 = vld [vmem:[%s1 + $0x78] sm:$0xf]
  %v85 = vld [vmem:[%s1 + $0x7c] sm:$0xf]
  %v98 = vunpack.c.l.b16 %v42
  %v99 = vunpack.c.h.b16 %v42
  %v100 = vunpack.c.l.b16 %v43
  %v101 = vunpack.c.h.b16 %v43
  %v102 = vunpack.c.l.b16 %v44
  %v103 = vunpack.c.h.b16 %v44
  %v104 = vunpack.c.l.b16 %v45
  %v105 = vunpack.c.h.b16 %v45
  %v106 = vunpack.c.l.b16 %v46
  %v107 = vunpack.c.h.b16 %v46
  %v108 = vunpack.c.l.b16 %v47
  %v109 = vunpack.c.h.b16 %v47
  %v110 = vunpack.c.l.b16 %v48
  %v111 = vunpack.c.h.b16 %v48
  %v112 = vunpack.c.l.b16 %v49
  %v113 = vunpack.c.h.b16 %v49
  %v114 = vunpack.c.l.b16 %v50
  %v115 = vunpack.c.h.b16 %v50
  %v116 = vunpack.c.l.b16 %v51
  %v117 = vunpack.c.h.b16 %v51
  %v118 = vunpack.c.l.b16 %v52
  %v119 = vunpack.c.h.b16 %v52
  %v120 = vunpack.c.l.b16 %v53
  %v121 = vunpack.c.h.b16 %v53
  %v122 = vpack.c.b16 %v100, %v98
  %v123 = vpack.c.b16 %v101, %v99
  %v124 = vpack.c.b16 %v104, %v102
  %v125 = vpack.c.b16 %v105, %v103
  %v126 = vpack.c.b16 %v108, %v106
  %v127 = vpack.c.b16 %v109, %v107
  %v128 = vpack.c.b16 %v112, %v110
  %v129 = vpack.c.b16 %v113, %v111
  %v130 = vpack.c.b16 %v116, %v114
  %v131 = vpack.c.b16 %v117, %v115
  %v132 = vpack.c.b16 %v120, %v118
  %v133 = vpack.c.b16 %v121, %v119
  %v178 = vunpack.c.l.b16 %v54
  %v179 = vunpack.c.l.b16 %v55
  %v180 = vunpack.c.l.b16 %v56
  %v181 = vunpack.c.l.b16 %v57
  %v182 = vunpack.c.l.b16 %v58
  %v183 = vunpack.c.l.b16 %v59
  %v184 = vunpack.c.l.b16 %v60
  %v185 = vunpack.c.l.b16 %v61
  %v186 = vunpack.c.l.b16 %v62
  %v187 = vunpack.c.l.b16 %v63
  %v188 = vunpack.c.l.b16 %v64
  %v189 = vunpack.c.l.b16 %v65
  %v190 = vunpack.c.l.b16 %v66
  %v191 = vunpack.c.l.b16 %v67
  %v192 = vunpack.c.l.b16 %v68
  %v193 = vunpack.c.l.b16 %v69
  %v194 = vunpack.c.l.b16 %v70
  %v195 = vunpack.c.l.b16 %v71
  %v196 = vunpack.c.l.b16 %v72
  %v197 = vunpack.c.l.b16 %v73
  %v198 = vunpack.c.l.b16 %v74
  %v199 = vunpack.c.l.b16 %v75
  %v200 = vunpack.c.l.b16 %v76
  %v201 = vunpack.c.l.b16 %v77
  %v202 = vunpack.c.l.b16 %v78
  %v203 = vunpack.c.l.b16 %v79
  %v204 = vunpack.c.l.b16 %v80
  %v205 = vunpack.c.l.b16 %v81
  %v206 = vunpack.c.l.b16 %v82
  %v207 = vunpack.c.l.b16 %v83
  %v208 = vunpack.c.l.b16 %v84
  %v209 = vunpack.c.l.b16 %v85
  %v210 = vpack.c.b16 %v179, %v178
  %v211 = vpack.c.b16 %v181, %v180
  %v212 = vpack.c.b16 %v183, %v182
  %v213 = vpack.c.b16 %v185, %v184
  %v214 = vpack.c.b16 %v187, %v186
  %v215 = vpack.c.b16 %v189, %v188
  %v216 = vpack.c.b16 %v191, %v190
  %v217 = vpack.c.b16 %v193, %v192
  %v218 = vpack.c.b16 %v195, %v194
  %v219 = vpack.c.b16 %v197, %v196
  %v220 = vpack.c.b16 %v199, %v198
  %v221 = vpack.c.b16 %v201, %v200
  %v222 = vpack.c.b16 %v203, %v202
  %v223 = vpack.c.b16 %v205, %v204
  %v224 = vpack.c.b16 %v207, %v206
  %v225 = vpack.c.b16 %v209, %v208
  %242 = vmatpush.bf16.msra.mxu0 %v217
  %243 = vmatpush.bf16.msra.mxu0 %v216
  %244 = vmatpush.bf16.msra.mxu0 %v215
  %245 = vmatpush.bf16.msra.mxu0 %v214
  %246 = vmatpush.bf16.msra.mxu0 %v213
  %247 = vmatpush.bf16.msra.mxu0 %v212
  %248 = vmatpush.bf16.msra.mxu0 %v211
  %249 = vmatpush.bf16.msra.mxu0 %v210
  %250 = vmatmul.bf16.gmra.mxu0 %v122
  %v251 = vpop.f32.mrf.mxu0
  %v252 = vadd.f32 0.0, %v251
  %v253 = vpop.f32.mrf.mxu0
  %v254 = vadd.f32 0.0, %v253
  %255 = vmatmul.bf16.gmra.mxu0 %v124
  %v256 = vpop.f32.mrf.mxu0
  %v257 = vadd.f32 0.0, %v256
  %v258 = vpop.f32.mrf.mxu0
  %v259 = vadd.f32 0.0, %v258
  %260 = vmatmul.bf16.gmra.mxu0 %v126
  %v261 = vpop.f32.mrf.mxu0
  %v262 = vadd.f32 0.0, %v261
  %v263 = vpop.f32.mrf.mxu0
  %v264 = vadd.f32 0.0, %v263
  %265 = vmatmul.bf16.gmra.mxu0 %v128
  %v266 = vpop.f32.mrf.mxu0
  %v267 = vadd.f32 0.0, %v266
  %v268 = vpop.f32.mrf.mxu0
  %v269 = vadd.f32 0.0, %v268
  %270 = vmatmul.bf16.gmra.mxu0 %v130
  %v271 = vpop.f32.mrf.mxu0
  %v272 = vadd.f32 0.0, %v271
  %v273 = vpop.f32.mrf.mxu0
  %v274 = vadd.f32 0.0, %v273
  %275 = vmatmul.bf16.gmra.mxu0 %v132
  %v276 = vpop.f32.mrf.mxu0
  %v277 = vadd.f32 0.0, %v276
  %v278 = vpop.f32.mrf.mxu0
  %v279 = vadd.f32 0.0, %v278
  %280 = vdwg.mxu0
  %281 = vmatpush.bf16.msra.mxu0 %v225
  %282 = vmatpush.bf16.msra.mxu0 %v224
  %283 = vmatpush.bf16.msra.mxu0 %v223
  %284 = vmatpush.bf16.msra.mxu0 %v222
  %285 = vmatpush.bf16.msra.mxu0 %v221
  %286 = vmatpush.bf16.msra.mxu0 %v220
  %287 = vmatpush.bf16.msra.mxu0 %v219
  %288 = vmatpush.bf16.msra.mxu0 %v218
  %289 = vmatmul.bf16.gmra.mxu0 %v123
  %v290 = vpop.f32.mrf.mxu0
  %v291 = vadd.f32 %v252, %v290
  %v292 = vpop.f32.mrf.mxu0
  %v293 = vadd.f32 %v254, %v292
  %294 = vmatmul.bf16.gmra.mxu0 %v125
  %v295 = vpop.f32.mrf.mxu0
  %v296 = vadd.f32 %v257, %v295
  %v297 = vpop.f32.mrf.mxu0
  %v298 = vadd.f32 %v259, %v297
  %299 = vmatmul.bf16.gmra.mxu0 %v127
  %v300 = vpop.f32.mrf.mxu0
  %v301 = vadd.f32 %v262, %v300
  %v302 = vpop.f32.mrf.mxu0
  %v303 = vadd.f32 %v264, %v302
  %304 = vmatmul.bf16.gmra.mxu0 %v129
  %v305 = vpop.f32.mrf.mxu0
  %v306 = vadd.f32 %v267, %v305
  %v307 = vpop.f32.mrf.mxu0
  %v308 = vadd.f32 %v269, %v307
  %309 = vmatmul.bf16.gmra.mxu0 %v131
  %v310 = vpop.f32.mrf.mxu0
  %v311 = vadd.f32 %v272, %v310
  %v312 = vpop.f32.mrf.mxu0
  %v313 = vadd.f32 %v274, %v312
  %314 = vmatmul.bf16.gmra.mxu0 %v133
  %v315 = vpop.f32.mrf.mxu0
  %v316 = vadd.f32 %v277, %v315
  %v317 = vpop.f32.mrf.mxu0
  %v318 = vadd.f32 %v279, %v317
  %319 = vdwg.mxu0
  %v320 = vadd.f32 %v30, %v291
  %v321 = vadd.f32 %v31, %v293
  %v322 = vadd.f32 %v32, %v296
  %v323 = vadd.f32 %v33, %v298
  %v324 = vadd.f32 %v34, %v301
  %v325 = vadd.f32 %v35, %v303
  %v326 = vadd.f32 %v36, %v306
  %v327 = vadd.f32 %v37, %v308
  %v328 = vadd.f32 %v38, %v311
  %v329 = vadd.f32 %v39, %v313
  %v330 = vadd.f32 %v40, %v316
  %v331 = vadd.f32 %v41, %v318
  %332 = vst [vmem:[#allocation2] sm:$0xff] %v320
  %333 = vst [vmem:[#allocation2 + $0x8] sm:$0xff] %v321
  %334 = vst [vmem:[#allocation2 + $0x10] sm:$0xff] %v322
  %335 = vst [vmem:[#allocation2 + $0x18] sm:$0xff] %v323
  %336 = vst [vmem:[#allocation2 + $0x20] sm:$0xff] %v324
  %337 = vst [vmem:[#allocation2 + $0x28] sm:$0xff] %v325
  %338 = vst [vmem:[#allocation2 + $0x30] sm:$0xff] %v326
  %339 = vst [vmem:[#allocation2 + $0x38] sm:$0xff] %v327
  %340 = vst [vmem:[#allocation2 + $0x40] sm:$0xff] %v328
  %341 = vst [vmem:[#allocation2 + $0x48] sm:$0xff] %v329
  %342 = vst [vmem:[#allocation2 + $0x50] sm:$0xff] %v330
  %343 = vst [vmem:[#allocation2 + $0x58] sm:$0xff] %v331
  // Predicated region
  $region18: #{_lambda_.1} parent=0 // pred_check
    %p344 = pneg %p14
  $region19: #{_lambda_.1} parent=0 // pred_check_branch
    %346 = sbr.rel (%p344) target = $region21
  $region20: #{_lambda_.1} parent=0 // pred_region
    %v347 = vld [vmem:[#allocation2] sm:$0xff]
    %v348 = vld [vmem:[#allocation2 + $0x8] sm:$0xff]
    %v349 = vld [vmem:[#allocation2 + $0x10] sm:$0xff]
    %v350 = vld [vmem:[#allocation2 + $0x18] sm:$0xff]
    %v351 = vld [vmem:[#allocation2 + $0x20] sm:$0xff]
    %v352 = vld [vmem:[#allocation2 + $0x28] sm:$0xff]
    %v353 = vld [vmem:[#allocation2 + $0x30] sm:$0xff]
    %v354 = vld [vmem:[#allocation2 + $0x38] sm:$0xff]
    %v355 = vld [vmem:[#allocation2 + $0x40] sm:$0xff]
    %v356 = vld [vmem:[#allocation2 + $0x48] sm:$0xff]
    %v357 = vld [vmem:[#allocation2 + $0x50] sm:$0xff]
    %v358 = vld [vmem:[#allocation2 + $0x58] sm:$0xff]
    %v359 = vld [vmem:[%s2] sm:$0x1]
    %v361 = vperm.slane %v359, 0
    %v363 = vadd.f32 %v347, %v361
    %v364 = vadd.f32 %v348, %v361
    %v365 = vadd.f32 %v349, %v361
    %v366 = vadd.f32 %v350, %v361
    %v367 = vadd.f32 %v351, %v361
    %v368 = vadd.f32 %v352, %v361
    %v369 = vadd.f32 %v353, %v361
    %v370 = vadd.f32 %v354, %v361
    %v371 = vadd.f32 %v355, %v361
    %v372 = vadd.f32 %v356, %v361
    %v373 = vadd.f32 %v357, %v361
    %v374 = vadd.f32 %v358, %v361
    %vm375 = vcmp.gt.f32.partialorder %v363, 0.0
    %vm376 = vcmp.gt.f32.partialorder %v364, 0.0
    %vm377 = vcmp.gt.f32.partialorder %v365, 0.0
    %vm378 = vcmp.gt.f32.partialorder %v366, 0.0
    %vm379 = vcmp.gt.f32.partialorder %v367, 0.0
    %vm380 = vcmp.gt.f32.partialorder %v368, 0.0
    %vm381 = vcmp.gt.f32.partialorder %v369, 0.0
    %vm382 = vcmp.gt.f32.partialorder %v370, 0.0
    %vm383 = vcmp.gt.f32.partialorder %v371, 0.0
    %vm384 = vcmp.gt.f32.partialorder %v372, 0.0
    %vm385 = vcmp.gt.f32.partialorder %v373, 0.0
    %vm386 = vcmp.gt.f32.partialorder %v374, 0.0
    %v387 = vmul.f32 %v363, 0.1
    %v388 = vmul.f32 %v364, 0.1
    %v389 = vmul.f32 %v365, 0.1
    %v390 = vmul.f32 %v366, 0.1
    %v391 = vmul.f32 %v367, 0.1
    %v392 = vmul.f32 %v368, 0.1
    %v393 = vmul.f32 %v369, 0.1
    %v394 = vmul.f32 %v370, 0.1
    %v395 = vmul.f32 %v371, 0.1
    %v396 = vmul.f32 %v372, 0.1
    %v397 = vmul.f32 %v373, 0.1
    %v398 = vmul.f32 %v374, 0.1
    %v399 = vsel %vm375, %v363, %v387
    %v400 = vsel %vm376, %v364, %v388
    %v401 = vsel %vm377, %v365, %v389
    %v402 = vsel %vm378, %v366, %v390
    %v403 = vsel %vm379, %v367, %v391
    %v404 = vsel %vm380, %v368, %v392
    %v405 = vsel %vm381, %v369, %v393
    %v406 = vsel %vm382, %v370, %v394
    %v407 = vsel %vm383, %v371, %v395
    %v408 = vsel %vm384, %v372, %v396
    %v409 = vsel %vm385, %v373, %v397
    %v410 = vsel %vm386, %v374, %v398
    %411 = vst [vmem:[%s3] sm:$0xff] %v399
    %412 = vst [vmem:[%s3 + $0x8] sm:$0xff] %v400
    %413 = vst [vmem:[%s3 + $0x10] sm:$0xff] %v401
    %414 = vst [vmem:[%s3 + $0x18] sm:$0xff] %v402
    %415 = vst [vmem:[%s3 + $0x20] sm:$0xff] %v403
    %416 = vst [vmem:[%s3 + $0x28] sm:$0xff] %v404
    %417 = vst [vmem:[%s3 + $0x30] sm:$0xff] %v405
    %418 = vst [vmem:[%s3 + $0x38] sm:$0xff] %v406
    %419 = vst [vmem:[%s3 + $0x40] sm:$0xff] %v407
    %420 = vst [vmem:[%s3 + $0x48] sm:$0xff] %v408
    %421 = vst [vmem:[%s3 + $0x50] sm:$0xff] %v409
    %422 = vst [vmem:[%s3 + $0x58] sm:$0xff] %v410
  $region21: #{_lambda_.1} parent=0 // pred_fallthru
    _
  // Predicated region
  $region22: #{_lambda_.1} parent=0 // pred_check
    _
  $region23: #{_lambda_.1} parent=0 // pred_check_branch
    %424 = sbr.rel (0) target = $region25
  $region24: #{_lambda_.1} parent=0 // pred_region
    _
  $region25: #{_lambda_.1} parent=0 // pred_fallthru
    _
  // Predicated region
  $region26: #{_lambda_.1} parent=0 // pred_check
    _
  $region27: #{_lambda_.1} parent=0 // pred_check_branch
    %426 = sbr.rel (0) target = $region29
  $region28: #{_lambda_.1} parent=0 // pred_region
    _
  $region29: #{_lambda_.1} parent=0 // pred_fallthru
    _

</llo_original>
